<compile_context>
chip_gen: v7x
topology: tpu7x:2x2x1
jax: 0.10.0
libtpu: 0.0.40
codegen_flags: <defaults>
</compile_context>

<pallas_src>
import jax
import jax.numpy as jnp
from jax.experimental import pallas as pl
from jax.experimental.pallas import tpu as pltpu

_VMEM = pl.BlockSpec(memory_space=pltpu.MemorySpace.VMEM)

# Feature sizes.
_DX, _DC, _DG = 44, 128, 8          # x / CNN-feature / init_goal widths
_DIN = _DX + _DC + _DG              # 180 = 44 + 128 + 8
_H1, _H2, _DZ = 512, 128, 44        # fc1 out, fc2 out, latent dim

# Packed fc1 weight slab (rows, aligned to sublane granule 8).
_ROW_X = 0
_ROW_C = 48                         # x slab padded 44 -> 48 rows
_ROW_G = _ROW_C + _DC               # 176
_K1P   = _ROW_G + _DG               # 184 total rows

# Packed bias buffer column offsets (all lane-granule aligned).
_B1_OFF, _B2_OFF, _BM_OFF, _BV_OFF = 0, 512, 640, 768
_BBUF_W = 896


# ---------------------------------------------------------------------------
# Kernel: entire encoder forward, fully VMEM-resident, single dispatch.
# ---------------------------------------------------------------------------
def _encoder_kernel(x_ref, c_ref, g_ref, w1_ref, w2h_ref, b_ref,
                    means_ref, logv_ref):
    # Cast tiny f32 activations to bf16 in-registers (MXU operand dtype).
    xb = x_ref[...].astype(jnp.bfloat16)          # (B, 44)
    cb = c_ref[...].astype(jnp.bfloat16)          # (B, 128)
    gb = g_ref[...].astype(jnp.bfloat16)          # (B, 8)

    # fc1 as sum of three matmuls against aligned slabs of the packed weight
    # buffer (== fc1(cat(x, c, init_goal))); f32 accumulation + bias + ReLU.
    h = (jnp.dot(xb, w1_ref[_ROW_X:_ROW_X + _DX, :],
                 preferred_element_type=jnp.float32)
         + jnp.dot(cb, w1_ref[_ROW_C:_ROW_C + _DC, :],
                   preferred_element_type=jnp.float32)
         + jnp.dot(gb, w1_ref[_ROW_G:_ROW_G + _DG, :],
                   preferred_element_type=jnp.float32)
         + b_ref[:, _B1_OFF:_B1_OFF + _H1])
    h = jnp.maximum(h, 0.0)

    # TODO(synk): Dropout(p=0.5) is eval-mode identity (no RNG mask / 1/(1-p)).

    # fc2 + ReLU.
    h2 = jnp.dot(h.astype(jnp.bfloat16), w2h_ref[0:_H1, :],
                 preferred_element_type=jnp.float32) \
         + b_ref[:, _B2_OFF:_B2_OFF + _H2]
    h2 = jnp.maximum(h2, 0.0)
    h2b = h2.astype(jnp.bfloat16)

    # Heads: two small matmuls against row-stacked head weights; results are
    # stored straight into the exact-shape output refs (no post-kernel slices).
    means = jnp.dot(h2b, w2h_ref[_H1:_H1 + _H2, 0:_DZ],
                    preferred_element_type=jnp.float32) \
            + b_ref[:, _BM_OFF:_BM_OFF + _DZ]
    logv = jnp.dot(h2b, w2h_ref[_H1 + _H2:_H1 + 2 * _H2, 0:_DZ],
                   preferred_element_type=jnp.float32) \
           + b_ref[:, _BV_OFF:_BV_OFF + _DZ]

    means_ref[...] = means.astype(means_ref.dtype)
    logv_ref[...] = logv.astype(logv_ref.dtype)


# ---------------------------------------------------------------------------
# Wrapper: zero pre/post XLA work — inputs go straight in, (B,44) outs come out.
# ---------------------------------------------------------------------------
def cnn_encoder_forward(params, x, c, init_goal):
    B = x.shape[0]
    means, log_vars = pl.pallas_call(
        _encoder_kernel,
        out_shape=(jax.ShapeDtypeStruct((B, _DZ), jnp.float32),
                   jax.ShapeDtypeStruct((B, _DZ), jnp.float32)),
        in_specs=[_VMEM] * 6,
        out_specs=(_VMEM, _VMEM),
    )(x, c, init_goal, params["w1"], params["w2h"], params["b"])
    return means, log_vars


# ---------------------------------------------------------------------------
# Deterministic synthetic parameters, packed into 3 buffers.
# Logical layout matches torch: fc1 rows ordered [x(44) | c(128) | goal(8)],
# weights stored as (in, out) == torch weight.T.
# ---------------------------------------------------------------------------
def init_params(key):
    ks = iter(jax.random.split(key, 8))
    s = 0.05

    def dense(din, dout):
        w = jax.random.normal(next(ks), (din, dout), jnp.float32) * s
        b = jax.random.normal(next(ks), (dout,), jnp.float32) * s
        return w, b

    w1, b1 = dense(_DIN, _H1)     # (180, 512)
    w2, b2 = dense(_H1, _H2)      # (512, 128)
    wm, bm = dense(_H2, _DZ)      # (128, 44)
    wv, bv = dense(_H2, _DZ)      # (128, 44)

    # fc1 slab (184, 512): [x rows padded to 48 | c rows | goal rows].
    wbuf1 = jnp.zeros((_K1P, _H1), jnp.float32)
    wbuf1 = wbuf1.at[_ROW_X:_ROW_X + _DX, :].set(w1[0:_DX])
    wbuf1 = wbuf1.at[_ROW_C:_ROW_C + _DC, :].set(w1[_DX:_DX + _DC])
    wbuf1 = wbuf1.at[_ROW_G:_ROW_G + _DG, :].set(w1[_DX + _DC:_DIN])

    # fc2 + heads slab (768, 128): rows [w2 | W_means | W_logvar] (cols 44:128
    # of the head regions are zero padding, never read).
    wbuf2 = jnp.zeros((_H1 + 2 * _H2, _H2), jnp.float32)
    wbuf2 = wbuf2.at[0:_H1, :].set(w2)
    wbuf2 = wbuf2.at[_H1:_H1 + _H2, 0:_DZ].set(wm)
    wbuf2 = wbuf2.at[_H1 + _H2:_H1 + 2 * _H2, 0:_DZ].set(wv)

    # All biases in one f32 buffer, each at a lane-aligned offset.
    bbuf = jnp.zeros((_BBUF_W,), jnp.float32)
    bbuf = bbuf.at[_B1_OFF:_B1_OFF + _H1].set(b1)
    bbuf = bbuf.at[_B2_OFF:_B2_OFF + _H2].set(b2)
    bbuf = bbuf.at[_BM_OFF:_BM_OFF + _DZ].set(bm)
    bbuf = bbuf.at[_BV_OFF:_BV_OFF + _DZ].set(bv)

    return {"w1": wbuf1.astype(jnp.bfloat16),
            "w2h": wbuf2.astype(jnp.bfloat16),
            "b": bbuf[None, :]}


# Pure-JAX reference with identical packing / precision choices
# (bf16 MXU operands, f32 accumulation).
def reference_forward(params, x, c, init_goal):
    w1, w2h, b = params["w1"], params["w2h"], params["b"]
    xb = x.astype(jnp.bfloat16)
    cb = c.astype(jnp.bfloat16)
    gb = init_goal.astype(jnp.bfloat16)
    h = (jnp.dot(xb, w1[_ROW_X:_ROW_X + _DX, :], preferred_element_type=jnp.float32)
         + jnp.dot(cb, w1[_ROW_C:_ROW_C + _DC, :], preferred_element_type=jnp.float32)
         + jnp.dot(gb, w1[_ROW_G:_ROW_G + _DG, :], preferred_element_type=jnp.float32)
         + b[:, _B1_OFF:_B1_OFF + _H1])
    h = jnp.maximum(h, 0.0)
    h2 = jnp.maximum(
        jnp.dot(h.astype(jnp.bfloat16), w2h[0:_H1, :],
                preferred_element_type=jnp.float32)
        + b[:, _B2_OFF:_B2_OFF + _H2], 0.0)
    h2b = h2.astype(jnp.bfloat16)
    means = jnp.dot(h2b, w2h[_H1:_H1 + _H2, 0:_DZ],
                    preferred_element_type=jnp.float32) + b[:, _BM_OFF:_BM_OFF + _DZ]
    logv = jnp.dot(h2b, w2h[_H1 + _H2:_H1 + 2 * _H2, 0:_DZ],
                   preferred_element_type=jnp.float32) + b[:, _BV_OFF:_BV_OFF + _DZ]
    return means, logv


if __name__ == "__main__":
    key = jax.random.PRNGKey(0)
    kp, kx, kc, kg = jax.random.split(key, 4)
    params = init_params(kp)

    B = 2
    x = jax.random.normal(kx, (B, _DX), jnp.float32)           # state features
    c = jax.random.normal(kc, (B, _DC), jnp.float32)           # 128-d CNN feature
    init_goal = jax.random.normal(kg, (B, _DG), jnp.float32)   # 4 + 4 goal features

    fwd = jax.jit(cnn_encoder_forward)
    means, log_vars = fwd(params, x, c, init_goal)
    jax.block_until_ready((means, log_vars))

    assert means.shape == (B, _DZ)
    assert log_vars.shape == (B, _DZ)
    assert bool(jnp.all(jnp.isfinite(means)))
    assert bool(jnp.all(jnp.isfinite(log_vars)))

    m_ref, lv_ref = jax.jit(reference_forward)(params, x, c, init_goal)
    assert bool(jnp.allclose(means, m_ref, rtol=1e-2, atol=1e-2))
    assert bool(jnp.allclose(log_vars, lv_ref, rtol=1e-2, atol=1e-2))

    print("KERNEL_OK")
</pallas_src>

<mosaic_0001>
module attributes {stable_mosaic.version = 11 : i64} {
  func.func @_encoder_kernel(%arg0: memref<2x44xf32, #tpu.memory_space<vmem>>, %arg1: memref<2x128xf32, #tpu.memory_space<vmem>>, %arg2: memref<2x8xf32, #tpu.memory_space<vmem>>, %arg3: memref<184x512xbf16, #tpu.memory_space<vmem>>, %arg4: memref<768x128xbf16, #tpu.memory_space<vmem>>, %arg5: memref<1x896xf32, #tpu.memory_space<vmem>>, %arg6: memref<2x44xf32, #tpu.memory_space<vmem>>, %arg7: memref<2x44xf32, #tpu.memory_space<vmem>>) attributes {dimension_semantics = [], scalar_prefetch = 0 : i64, scratch_operands = 0 : i64, tpu.core_type = #tpu.core_type<tc>} {
    %c0 = arith.constant 0 : index
    %c0_0 = arith.constant 0 : index
    %0 = vector.load %arg0[%c0, %c0_0] : memref<2x44xf32, #tpu.memory_space<vmem>>, vector<2x44xf32>
    %1 = arith.truncf %0 : vector<2x44xf32> to vector<2x44xbf16>
    %c0_1 = arith.constant 0 : index
    %c0_2 = arith.constant 0 : index
    %2 = vector.load %arg1[%c0_1, %c0_2] : memref<2x128xf32, #tpu.memory_space<vmem>>, vector<2x128xf32>
    %3 = arith.truncf %2 : vector<2x128xf32> to vector<2x128xbf16>
    %c0_3 = arith.constant 0 : index
    %c0_4 = arith.constant 0 : index
    %4 = vector.load %arg2[%c0_3, %c0_4] : memref<2x8xf32, #tpu.memory_space<vmem>>, vector<2x8xf32>
    %5 = arith.truncf %4 : vector<2x8xf32> to vector<2x8xbf16>
    %c0_5 = arith.constant 0 : index
    %c0_6 = arith.constant 0 : index
    %6 = vector.load %arg3[%c0_5, %c0_6] : memref<184x512xbf16, #tpu.memory_space<vmem>>, vector<44x512xbf16>
    %cst = arith.constant dense<0.000000e+00> : vector<2x512xf32>
    %7 = tpu.matmul %1, %6, %cst {dimension_numbers = #tpu.dot_dimension_numbers<[1], [0], [0], [1], [0, 0, 1, 1], [], []>} : vector<2x44xbf16>, vector<44x512xbf16>, vector<2x512xf32> -> vector<2x512xf32>
    %c48 = arith.constant 48 : index
    %c0_7 = arith.constant 0 : index
    %8 = vector.load %arg3[%c48, %c0_7] : memref<184x512xbf16, #tpu.memory_space<vmem>>, vector<128x512xbf16>
    %cst_8 = arith.constant dense<0.000000e+00> : vector<2x512xf32>
    %9 = tpu.matmul %3, %8, %cst_8 {dimension_numbers = #tpu.dot_dimension_numbers<[1], [0], [0], [1], [0, 0, 1, 1], [], []>} : vector<2x128xbf16>, vector<128x512xbf16>, vector<2x512xf32> -> vector<2x512xf32>
    %10 = arith.addf %7, %9 : vector<2x512xf32>
    %c176 = arith.constant 176 : index
    %c0_9 = arith.constant 0 : index
    %11 = vector.load %arg3[%c176, %c0_9] : memref<184x512xbf16, #tpu.memory_space<vmem>>, vector<8x512xbf16>
    %cst_10 = arith.constant dense<0.000000e+00> : vector<2x512xf32>
    %12 = tpu.matmul %5, %11, %cst_10 {dimension_numbers = #tpu.dot_dimension_numbers<[1], [0], [0], [1], [0, 0, 1, 1], [], []>} : vector<2x8xbf16>, vector<8x512xbf16>, vector<2x512xf32> -> vector<2x512xf32>
    %13 = arith.addf %10, %12 : vector<2x512xf32>
    %c0_11 = arith.constant 0 : index
    %c0_12 = arith.constant 0 : index
    %14 = vector.load %arg5[%c0_11, %c0_12] : memref<1x896xf32, #tpu.memory_space<vmem>>, vector<1x512xf32>
    %15 = vector.broadcast %14 : vector<1x512xf32> to vector<2x512xf32>
    %16 = arith.addf %13, %15 : vector<2x512xf32>
    %cst_13 = arith.constant 0.000000e+00 : f32
    %17 = vector.broadcast %cst_13 : f32 to vector<2x512xf32>
    %18 = arith.maximumf %16, %17 : vector<2x512xf32>
    %19 = arith.truncf %18 : vector<2x512xf32> to vector<2x512xbf16>
    %c0_14 = arith.constant 0 : index
    %c0_15 = arith.constant 0 : index
    %20 = vector.load %arg4[%c0_14, %c0_15] : memref<768x128xbf16, #tpu.memory_space<vmem>>, vector<512x128xbf16>
    %cst_16 = arith.constant dense<0.000000e+00> : vector<2x128xf32>
    %21 = tpu.matmul %19, %20, %cst_16 {dimension_numbers = #tpu.dot_dimension_numbers<[1], [0], [0], [1], [0, 0, 1, 1], [], []>} : vector<2x512xbf16>, vector<512x128xbf16>, vector<2x128xf32> -> vector<2x128xf32>
    %c0_17 = arith.constant 0 : index
    %c512 = arith.constant 512 : index
    %22 = vector.load %arg5[%c0_17, %c512] : memref<1x896xf32, #tpu.memory_space<vmem>>, vector<1x128xf32>
    %23 = vector.broadcast %22 : vector<1x128xf32> to vector<2x128xf32>
    %24 = arith.addf %21, %23 : vector<2x128xf32>
    %cst_18 = arith.constant 0.000000e+00 : f32
    %25 = vector.broadcast %cst_18 : f32 to vector<2x128xf32>
    %26 = arith.maximumf %24, %25 : vector<2x128xf32>
    %27 = arith.truncf %26 : vector<2x128xf32> to vector<2x128xbf16>
    %c512_19 = arith.constant 512 : index
    %c0_20 = arith.constant 0 : index
    %28 = vector.load %arg4[%c512_19, %c0_20] : memref<768x128xbf16, #tpu.memory_space<vmem>>, vector<128x44xbf16>
    %cst_21 = arith.constant dense<0.000000e+00> : vector<2x44xf32>
    %29 = tpu.matmul %27, %28, %cst_21 {dimension_numbers = #tpu.dot_dimension_numbers<[1], [0], [0], [1], [0, 0, 1, 1], [], []>} : vector<2x128xbf16>, vector<128x44xbf16>, vector<2x44xf32> -> vector<2x44xf32>
    %c0_22 = arith.constant 0 : index
    %c640 = arith.constant 640 : index
    %30 = vector.load %arg5[%c0_22, %c640] : memref<1x896xf32, #tpu.memory_space<vmem>>, vector<1x44xf32>
    %31 = vector.broadcast %30 : vector<1x44xf32> to vector<2x44xf32>
    %32 = arith.addf %29, %31 : vector<2x44xf32>
    %c640_23 = arith.constant 640 : index
    %c0_24 = arith.constant 0 : index
    %33 = vector.load %arg4[%c640_23, %c0_24] : memref<768x128xbf16, #tpu.memory_space<vmem>>, vector<128x44xbf16>
    %cst_25 = arith.constant dense<0.000000e+00> : vector<2x44xf32>
    %34 = tpu.matmul %27, %33, %cst_25 {dimension_numbers = #tpu.dot_dimension_numbers<[1], [0], [0], [1], [0, 0, 1, 1], [], []>} : vector<2x128xbf16>, vector<128x44xbf16>, vector<2x44xf32> -> vector<2x44xf32>
    %c0_26 = arith.constant 0 : index
    %c768 = arith.constant 768 : index
    %35 = vector.load %arg5[%c0_26, %c768] : memref<1x896xf32, #tpu.memory_space<vmem>>, vector<1x44xf32>
    %36 = vector.broadcast %35 : vector<1x44xf32> to vector<2x44xf32>
    %37 = arith.addf %34, %36 : vector<2x44xf32>
    %c0_27 = arith.constant 0 : index
    %c0_28 = arith.constant 0 : index
    %38 = vector.load %arg6[%c0_27, %c0_28] : memref<2x44xf32, #tpu.memory_space<vmem>>, vector<2x44xf32>
    tpu.vector_store %arg6[%c0_27, %c0_28], %32 {strides = array<i32>} : memref<2x44xf32, #tpu.memory_space<vmem>>, vector<2x44xf32>,
    %c0_29 = arith.constant 0 : index
    %c0_30 = arith.constant 0 : index
    %39 = vector.load %arg7[%c0_29, %c0_30] : memref<2x44xf32, #tpu.memory_space<vmem>>, vector<2x44xf32>
    tpu.vector_store %arg7[%c0_29, %c0_30], %37 {strides = array<i32>} : memref<2x44xf32, #tpu.memory_space<vmem>>, vector<2x44xf32>,
    return
  }
}

</mosaic_0001>

<llo_original>
// kernel: cnn_encoder_forward.1
$region0: #{cnn_encoder_forward.1}
  #allocation0 [shape = 'u32[]', space=smem, size = 0x4, offset = 0x4, fixed_abs, tag = 'smem constant byte address 0x4 - core index']
  #allocation1 [shape = 'u32[144,128]{1,0:T(1,128)}', space=vmem, size = 0x12000, scoped, tag = 'internal scratch']
  %s0 = inlined_call_operand.vmem [shape: f32[2,44], index: 0, kind: input, shape index: {}]
  %s1 = inlined_call_operand.vmem [shape: f32[2,128], index: 1, kind: input, shape index: {}]
  %s2 = inlined_call_operand.vmem [shape: f32[2,8], index: 2, kind: input, shape index: {}]
  %s3 = inlined_call_operand.hbm [shape: bf16[184,512], index: 3, kind: input, shape index: {}]
  %s4 = inlined_call_operand.hbm [shape: bf16[768,128], index: 4, kind: input, shape index: {}]
  %s5 = inlined_call_operand.hbm [shape: f32[1,896], index: 5, kind: input, shape index: {}]
  %s6 = inlined_call_operand.hbm [shape: f32[2,44], index: 6, kind: output, shape index: {0}]
  %s7 = inlined_call_operand.hbm [shape: f32[2,44], index: 7, kind: output, shape index: {1}]
  %8 = xla_tuple %s6, %s7
  %s9 = sld [smem:[#allocation0]]
  $region54: #{cnn_encoder_forward.1} parent=0
    _
  %s11 = ssub.s32 1, %s9
  %s12 = scalar_select 0, %s11, %s9
  $region1: #{cnn_encoder_forward.1} parent=0
    #allocation2 [shape = 'u8[188416]{0}', space=vmem, size = 0x2e000, scoped, tag = 'input window, operand 3, single buffered']
    #allocation3 [shape = 's32[1]{0}', space=sflag, size = 0x4, scoped, tag = 'scoped memory for cnn_encoder_forward.1']
    #allocation4 [shape = 's32[1]{0}', space=sflag, size = 0x4, scoped, tag = 'scoped memory for cnn_encoder_forward.1']
    #allocation5 [shape = 'u8[196608]{0}', space=vmem, size = 0x30000, scoped, tag = 'input window, operand 4, single buffered']
    #allocation6 [shape = 's32[1]{0}', space=sflag, size = 0x4, scoped, tag = 'scoped memory for cnn_encoder_forward.1']
    #allocation7 [shape = 'u8[3584]{0}', space=vmem, size = 0x1000, scoped, tag = 'input window, operand 5, single buffered']
    #allocation8 [shape = 'u8[1024]{0}', space=vmem, size = 0x400, scoped, tag = 'output window, operand 0, single buffered']
    #allocation9 [shape = 'u8[1024]{0}', space=vmem, size = 0x400, scoped, tag = 'output window, operand 1, single buffered']
    #allocation10 [shape = 's32[1]{0}', space=sflag, size = 0x4, scoped, tag = 'scoped memory for cnn_encoder_forward.1']
    %13 = vsyncpa [#allocation3], 0
    %14 = vsyncpa [#allocation6], 0
    %15 = vsyncpa [#allocation4], 0
    %16 = vsyncpa [#allocation10], 0
    // Predicated region
    $region2: #{cnn_encoder_forward.1} parent=1 // pred_check
      _
    $region3: #{cnn_encoder_forward.1} parent=1 // pred_check_branch
      %18 = sbr.rel (0) target = $region5
    $region4: #{cnn_encoder_forward.1} parent=1 // pred_region
      _
    $region5: #{cnn_encoder_forward.1} parent=1 // pred_fallthru
      _
    // Predicated region
    $region6: #{cnn_encoder_forward.1} parent=1 // pred_check
      _
    $region7: #{cnn_encoder_forward.1} parent=1 // pred_check_branch
      %20 = sbr.rel (0) target = $region9
    $region8: #{cnn_encoder_forward.1} parent=1 // pred_region
      _
    $region9: #{cnn_encoder_forward.1} parent=1 // pred_fallthru
      _
    // Predicated region
    $region10: #{cnn_encoder_forward.1} parent=1 // pred_check
      _
    $region11: #{cnn_encoder_forward.1} parent=1 // pred_check_branch
      %22 = sbr.rel (0) target = $region13
    $region12: #{cnn_encoder_forward.1} parent=1 // pred_region
      _
    $region13: #{cnn_encoder_forward.1} parent=1 // pred_fallthru
      _
    // Predicated region
    $region14: #{cnn_encoder_forward.1} parent=1 // pred_check
      _
    $region15: #{cnn_encoder_forward.1} parent=1 // pred_check_branch
      %24 = sbr.rel (0) target = $region17
    $region16: #{cnn_encoder_forward.1} parent=1 // pred_region
      %s26 = ssub.s32 5888, 5888
      %27 = vsyncadd [#allocation3], %s26
      %s28 = sshll.u32 [#allocation2], 4
      %s29 = int_to_ptr.vmem [resolvable:$true] %s28
      %34 = dma.hbm_to_vmem [thread:$0]  %s3, 5888, %s29, [#allocation3], 256, 256, 16
    $region17: #{cnn_encoder_forward.1} parent=1 // pred_fallthru
      _
    // Predicated region
    $region18: #{cnn_encoder_forward.1} parent=1 // pred_check
      _
    $region19: #{cnn_encoder_forward.1} parent=1 // pred_check_branch
      %36 = sbr.rel (0) target = $region21
    $region20: #{cnn_encoder_forward.1} parent=1 // pred_region
      %s38 = ssub.s32 6144, 6144
      %39 = vsyncadd [#allocation6], %s38
      %s40 = sshll.u32 [#allocation5], 4
      %s41 = int_to_ptr.vmem [resolvable:$true] %s40
      %46 = dma.hbm_to_vmem [thread:$0]  %s4, 6144, %s41, [#allocation6], 64, 64, 4
    $region21: #{cnn_encoder_forward.1} parent=1 // pred_fallthru
      _
    // Predicated region
    $region22: #{cnn_encoder_forward.1} parent=1 // pred_check
      _
    $region23: #{cnn_encoder_forward.1} parent=1 // pred_check_branch
      %48 = sbr.rel (0) target = $region25
    $region24: #{cnn_encoder_forward.1} parent=1 // pred_region
      %s50 = ssub.s32 112, 112
      %51 = vsyncadd [#allocation6], %s50
      %s53 = sshll.u32 [#allocation7], 4
      %s54 = int_to_ptr.vmem [resolvable:$true] %s53
      %56 = dma.hbm_to_vmem [thread:$0]  %s5, 112, %s54, [#allocation6]
    $region25: #{cnn_encoder_forward.1} parent=1 // pred_fallthru
      _
    // Predicated region
    $region26: #{cnn_encoder_forward.1} parent=1 // pred_check
      _
    $region27: #{cnn_encoder_forward.1} parent=1 // pred_check_branch
      %58 = sbr.rel (0) target = $region29
    $region28: #{cnn_encoder_forward.1} parent=1 // pred_region
      %59 = dma.done [#allocation3], 5888
    $region29: #{cnn_encoder_forward.1} parent=1 // pred_fallthru
      _
    // Predicated region
    $region30: #{cnn_encoder_forward.1} parent=1 // pred_check
      _
    $region31: #{cnn_encoder_forward.1} parent=1 // pred_check_branch
      %61 = sbr.rel (0) target = $region33
    $region32: #{cnn_encoder_forward.1} parent=1 // pred_region
      %62 = dma.done [#allocation6], 6144
    $region33: #{cnn_encoder_forward.1} parent=1 // pred_fallthru
      _
    // Predicated region
    $region34: #{cnn_encoder_forward.1} parent=1 // pred_check
      _
    $region35: #{cnn_encoder_forward.1} parent=1 // pred_check_branch
      %64 = sbr.rel (0) target = $region37
    $region36: #{cnn_encoder_forward.1} parent=1 // pred_region
      %65 = dma.done [#allocation6], 112
    $region37: #{cnn_encoder_forward.1} parent=1 // pred_fallthru
      _
    %v67 = vld [vmem:[%s0] sm:$0x3]
    %v68 = vpack.c.bf16 %v67, %v67
    %v69 = vld [vmem:[%s1] sm:$0x3]
    %v70 = vpack.c.bf16 %v69, %v69
    %v71 = vld [vmem:[%s2] sm:$0x3]
    %v72 = vpack.c.bf16 %v71, %v71
    %v73 = vld [vmem:[#allocation2] sm:$0xff]
    %v74 = vld [vmem:[#allocation2 + $0x8] sm:$0xff]
    %v75 = vld [vmem:[#allocation2 + $0x10] sm:$0xff]
    %v76 = vld [vmem:[#allocation2 + $0x18] sm:$0xff]
    %v77 = vld [vmem:[#allocation2 + $0x20] sm:$0xff]
    %v78 = vld [vmem:[#allocation2 + $0x28] sm:$0xff]
    %v79 = vld [vmem:[#allocation2 + $0x30] sm:$0xff]
    %v80 = vld [vmem:[#allocation2 + $0x38] sm:$0xff]
    %v81 = vld [vmem:[#allocation2 + $0x40] sm:$0xff]
    %v82 = vld [vmem:[#allocation2 + $0x48] sm:$0xff]
    %v83 = vld [vmem:[#allocation2 + $0x50] sm:$0x33]
    %v84 = vld [vmem:[#allocation2 + $0x58] sm:$0x33]
    %v85 = vld [vmem:[#allocation2 + $0x60] sm:$0xff]
    %v86 = vld [vmem:[#allocation2 + $0x68] sm:$0xff]
    %v87 = vld [vmem:[#allocation2 + $0x70] sm:$0xff]
    %v88 = vld [vmem:[#allocation2 + $0x78] sm:$0xff]
    %v89 = vld [vmem:[#allocation2 + $0x80] sm:$0xff]
    %v90 = vld [vmem:[#allocation2 + $0x88] sm:$0xff]
    %v91 = vld [vmem:[#allocation2 + $0x90] sm:$0xff]
    %v92 = vld [vmem:[#allocation2 + $0x98] sm:$0xff]
    %v93 = vld [vmem:[#allocation2 + $0xa0] sm:$0xff]
    %v94 = vld [vmem:[#allocation2 + $0xa8] sm:$0xff]
    %v95 = vld [vmem:[#allocation2 + $0xb0] sm:$0xff]
    %v96 = vld [vmem:[#allocation2 + $0xb8] sm:$0xff]
    %v97 = vld [vmem:[#allocation2 + $0xc0] sm:$0xff]
    %v98 = vld [vmem:[#allocation2 + $0xc8] sm:$0xff]
    %v99 = vld [vmem:[#allocation2 + $0xd0] sm:$0xff]
    %v100 = vld [vmem:[#allocation2 + $0xd8] sm:$0xff]
    %v101 = vld [vmem:[#allocation2 + $0xe0] sm:$0xff]
    %v102 = vld [vmem:[#allocation2 + $0xe8] sm:$0xff]
    %v103 = vld [vmem:[#allocation2 + $0xf0] sm:$0xff]
    %v104 = vld [vmem:[#allocation2 + $0xf8] sm:$0xff]
    %v105 = vld [vmem:[#allocation2 + $0x100] sm:$0xff]
    %v106 = vld [vmem:[#allocation2 + $0x108] sm:$0xff]
    %v107 = vld [vmem:[#allocation2 + $0x110] sm:$0xff]
    %v108 = vld [vmem:[#allocation2 + $0x118] sm:$0xff]
    %v109 = vld [vmem:[#allocation2 + $0x120] sm:$0xff]
    %v110 = vld [vmem:[#allocation2 + $0x128] sm:$0xff]
    %v111 = vld [vmem:[#allocation2 + $0x130] sm:$0xff]
    %v112 = vld [vmem:[#allocation2 + $0x138] sm:$0xff]
    %v113 = vld [vmem:[#allocation2 + $0x140] sm:$0xff]
    %v114 = vld [vmem:[#allocation2 + $0x148] sm:$0xff]
    %v115 = vld [vmem:[#allocation2 + $0x150] sm:$0xff]
    %v116 = vld [vmem:[#allocation2 + $0x158] sm:$0xff]
    %v149 = vunpack.c.l.b16 %v85
    %v150 = vunpack.c.h.b16 %v85
    %v151 = vunpack.c.l.b16 %v86
    %v152 = vunpack.c.h.b16 %v86
    %v153 = vunpack.c.l.b16 %v87
    %v154 = vunpack.c.h.b16 %v87
    %v155 = vunpack.c.l.b16 %v88
    %v156 = vunpack.c.h.b16 %v88
    %v157 = vunpack.c.l.b16 %v89
    %v158 = vunpack.c.h.b16 %v89
    %v159 = vunpack.c.l.b16 %v90
    %v160 = vunpack.c.h.b16 %v90
    %v161 = vunpack.c.l.b16 %v91
    %v162 = vunpack.c.h.b16 %v91
    %v163 = vunpack.c.l.b16 %v92
    %v164 = vunpack.c.h.b16 %v92
    %v165 = vunpack.c.l.b16 %v93
    %v166 = vunpack.c.h.b16 %v93
    %v167 = vunpack.c.l.b16 %v94
    %v168 = vunpack.c.h.b16 %v94
    %v169 = vunpack.c.l.b16 %v95
    %v170 = vunpack.c.h.b16 %v95
    %v171 = vunpack.c.l.b16 %v96
    %v172 = vunpack.c.h.b16 %v96
    %v173 = vunpack.c.l.b16 %v97
    %v174 = vunpack.c.h.b16 %v97
    %v175 = vunpack.c.l.b16 %v98
    %v176 = vunpack.c.h.b16 %v98
    %v177 = vunpack.c.l.b16 %v99
    %v178 = vunpack.c.h.b16 %v99
    %v179 = vunpack.c.l.b16 %v100
    %v180 = vunpack.c.h.b16 %v100
    %v181 = vunpack.c.l.b16 %v101
    %v182 = vunpack.c.h.b16 %v101
    %v183 = vunpack.c.l.b16 %v102
    %v184 = vunpack.c.h.b16 %v102
    %v185 = vunpack.c.l.b16 %v103
    %v186 = vunpack.c.h.b16 %v103
    %v187 = vunpack.c.l.b16 %v104
    %v188 = vunpack.c.h.b16 %v104
    %v189 = vunpack.c.l.b16 %v105
    %v190 = vunpack.c.h.b16 %v105
    %v191 = vunpack.c.l.b16 %v106
    %v192 = vunpack.c.h.b16 %v106
    %v193 = vunpack.c.l.b16 %v107
    %v194 = vunpack.c.h.b16 %v107
    %v195 = vunpack.c.l.b16 %v108
    %v196 = vunpack.c.h.b16 %v108
    %v197 = vunpack.c.l.b16 %v109
    %v198 = vunpack.c.h.b16 %v109
    %v199 = vunpack.c.l.b16 %v110
    %v200 = vunpack.c.h.b16 %v110
    %v201 = vunpack.c.l.b16 %v111
    %v202 = vunpack.c.h.b16 %v111
    %v203 = vunpack.c.l.b16 %v112
    %v204 = vunpack.c.h.b16 %v112
    %v205 = vunpack.c.l.b16 %v113
    %v206 = vunpack.c.h.b16 %v113
    %v207 = vunpack.c.l.b16 %v114
    %v208 = vunpack.c.h.b16 %v114
    %v209 = vunpack.c.l.b16 %v115
    %v210 = vunpack.c.h.b16 %v115
    %v211 = vunpack.c.l.b16 %v116
    %v212 = vunpack.c.h.b16 %v116
    %v213 = vpack.c.b16 %v153, %v149
    %v214 = vpack.c.b16 %v154, %v150
    %v215 = vpack.c.b16 %v155, %v151
    %v216 = vpack.c.b16 %v156, %v152
    %v217 = vpack.c.b16 %v161, %v157
    %v218 = vpack.c.b16 %v162, %v158
    %v219 = vpack.c.b16 %v163, %v159
    %v220 = vpack.c.b16 %v164, %v160
    %v221 = vpack.c.b16 %v169, %v165
    %v222 = vpack.c.b16 %v170, %v166
    %v223 = vpack.c.b16 %v171, %v167
    %v224 = vpack.c.b16 %v172, %v168
    %v225 = vpack.c.b16 %v177, %v173
    %v226 = vpack.c.b16 %v178, %v174
    %v227 = vpack.c.b16 %v179, %v175
    %v228 = vpack.c.b16 %v180, %v176
    %v229 = vpack.c.b16 %v185, %v181
    %v230 = vpack.c.b16 %v186, %v182
    %v231 = vpack.c.b16 %v187, %v183
    %v232 = vpack.c.b16 %v188, %v184
    %v233 = vpack.c.b16 %v193, %v189
    %v234 = vpack.c.b16 %v194, %v190
    %v235 = vpack.c.b16 %v195, %v191
    %v236 = vpack.c.b16 %v196, %v192
    %v237 = vpack.c.b16 %v201, %v197
    %v238 = vpack.c.b16 %v202, %v198
    %v239 = vpack.c.b16 %v203, %v199
    %v240 = vpack.c.b16 %v204, %v200
    %v241 = vpack.c.b16 %v209, %v205
    %v242 = vpack.c.b16 %v210, %v206
    %v243 = vpack.c.b16 %v211, %v207
    %v244 = vpack.c.b16 %v212, %v208
    %277 = vmatprep.subr.bf16.mxu0 %v214
    %278 = vmatpush1.bf16.msra.mxu0 %v213
    %279 = vmatprep.subr.bf16.mxu0 %v218
    %280 = vmatpush1.bf16.msra.mxu0 %v217
    %281 = vmatprep.subr.bf16.mxu0 %v222
    %282 = vmatpush1.bf16.msra.mxu0 %v221
    %283 = vmatprep.subr.bf16.mxu0 %v226
    %284 = vmatpush1.bf16.msra.mxu0 %v225
    %285 = vmatprep.subr.bf16.mxu0 %v230
    %286 = vmatpush1.bf16.msra.mxu0 %v229
    %287 = vmatprep.subr.bf16.mxu0 %v234
    %288 = vmatpush1.bf16.msra.mxu0 %v233
    %289 = vmatprep.subr.bf16.mxu0 %v238
    %290 = vmatpush1.bf16.msra.mxu0 %v237
    %291 = vmatprep.subr.bf16.mxu0 %v242
    %292 = vmatpush1.bf16.msra.mxu0 %v241
    %293 = vmatprep.subr.bf16.mxu0 0
    %294 = vmatpush1.bf16.msra.mxu0 0
    %295 = vmatprep.subr.bf16.mxu0 0
    %296 = vmatpush1.bf16.msra.mxu0 0
    %297 = vmatprep.subr.bf16.mxu0 0
    %298 = vmatpush1.bf16.msra.mxu0 0
    %299 = vmatprep.subr.bf16.mxu0 0
    %300 = vmatpush1.bf16.msra.mxu0 0
    %301 = vmatprep.subr.bf16.mxu0 0
    %302 = vmatpush1.bf16.msra.mxu0 0
    %303 = vmatprep.subr.bf16.mxu0 0
    %304 = vmatpush1.bf16.msra.mxu0 0
    %305 = vmatprep.subr.bf16.mxu0 0
    %306 = vmatpush1.bf16.msra.mxu0 0
    %307 = vmatprep.subr.bf16.mxu0 0
    %308 = vmatpush1.bf16.msra.mxu0 0
    %309 = vmatprep.mubr.bf16.mxu0 0
    %310 = vmatmul.mubr.bf16.gmra.mrb[0].mxu0 %v70
    %v311 = vpop.f32.mrb[0].mxu0
    %v312 = vadd.f32 0.0, %v311
    %v313 = vpop.f32.mrb[0].mxu0
    %v314 = vadd.f32 0.0, %v313
    %v315 = vpop.f32.mrb[0].mxu0
    %v316 = vpop.f32.mrb[0].mxu0
    %317 = vdwg.mxu0
    %318 = vmatprep.subr.bf16.mxu0 %v216
    %319 = vmatpush1.bf16.msra.mxu0 %v215
    %320 = vmatprep.subr.bf16.mxu0 %v220
    %321 = vmatpush1.bf16.msra.mxu0 %v219
    %322 = vmatprep.subr.bf16.mxu0 %v224
    %323 = vmatpush1.bf16.msra.mxu0 %v223
    %324 = vmatprep.subr.bf16.mxu0 %v228
    %325 = vmatpush1.bf16.msra.mxu0 %v227
    %326 = vmatprep.subr.bf16.mxu0 %v232
    %327 = vmatpush1.bf16.msra.mxu0 %v231
    %328 = vmatprep.subr.bf16.mxu0 %v236
    %329 = vmatpush1.bf16.msra.mxu0 %v235
    %330 = vmatprep.subr.bf16.mxu0 %v240
    %331 = vmatpush1.bf16.msra.mxu0 %v239
    %332 = vmatprep.subr.bf16.mxu0 %v244
    %333 = vmatpush1.bf16.msra.mxu0 %v243
    %334 = vmatprep.subr.bf16.mxu0 0
    %335 = vmatpush1.bf16.msra.mxu0 0
    %336 = vmatprep.subr.bf16.mxu0 0
    %337 = vmatpush1.bf16.msra.mxu0 0
    %338 = vmatprep.subr.bf16.mxu0 0
    %339 = vmatpush1.bf16.msra.mxu0 0
    %340 = vmatprep.subr.bf16.mxu0 0
    %341 = vmatpush1.bf16.msra.mxu0 0
    %342 = vmatprep.subr.bf16.mxu0 0
    %343 = vmatpush1.bf16.msra.mxu0 0
    %344 = vmatprep.subr.bf16.mxu0 0
    %345 = vmatpush1.bf16.msra.mxu0 0
    %346 = vmatprep.subr.bf16.mxu0 0
    %347 = vmatpush1.bf16.msra.mxu0 0
    %348 = vmatprep.subr.bf16.mxu0 0
    %349 = vmatpush1.bf16.msra.mxu0 0
    %350 = vmatprep.mubr.bf16.mxu0 0
    %351 = vmatmul.mubr.bf16.gmra.mrb[0].mxu0 %v70
    %v352 = vpop.f32.mrb[0].mxu0
    %v353 = vadd.f32 0.0, %v352
    %v354 = vpop.f32.mrb[0].mxu0
    %v355 = vadd.f32 0.0, %v354
    %v356 = vpop.f32.mrb[0].mxu0
    %v357 = vpop.f32.mrb[0].mxu0
    %358 = vdwg.mxu0
    %v371 = vunpack.c.l.b16 %v73
    %v372 = vunpack.c.h.b16 %v73
    %v373 = vunpack.c.l.b16 %v74
    %v374 = vunpack.c.h.b16 %v74
    %v375 = vunpack.c.l.b16 %v75
    %v376 = vunpack.c.h.b16 %v75
    %v377 = vunpack.c.l.b16 %v76
    %v378 = vunpack.c.h.b16 %v76
    %v379 = vunpack.c.l.b16 %v77
    %v380 = vunpack.c.h.b16 %v77
    %v381 = vunpack.c.l.b16 %v78
    %v382 = vunpack.c.h.b16 %v78
    %v383 = vunpack.c.l.b16 %v79
    %v384 = vunpack.c.h.b16 %v79
    %v385 = vunpack.c.l.b16 %v80
    %v386 = vunpack.c.h.b16 %v80
    %v387 = vunpack.c.l.b16 %v81
    %v388 = vunpack.c.h.b16 %v81
    %v389 = vunpack.c.l.b16 %v82
    %v390 = vunpack.c.h.b16 %v82
    %v391 = vunpack.c.l.b16 %v83
    %v392 = vunpack.c.h.b16 %v83
    %v393 = vunpack.c.l.b16 %v84
    %v394 = vunpack.c.h.b16 %v84
    %v395 = vpack.c.b16 %v375, %v371
    %v396 = vpack.c.b16 %v376, %v372
    %v397 = vpack.c.b16 %v377, %v373
    %v398 = vpack.c.b16 %v378, %v374
    %v399 = vpack.c.b16 %v383, %v379
    %v400 = vpack.c.b16 %v384, %v380
    %v401 = vpack.c.b16 %v385, %v381
    %v402 = vpack.c.b16 %v386, %v382
    %v403 = vpack.c.b16 %v391, %v387
    %v404 = vpack.c.b16 %v392, %v388
    %v405 = vpack.c.b16 %v393, %v389
    %v406 = vpack.c.b16 %v394, %v390
    %vm415 = vcmask 359424
    %v417 = vsel %vm415, %v68, 0
    %vm419 = vcmask 1045504
    %v421 = vsel %vm419, %v403, 0
    %v424 = vsel %vm419, %v404, 0
    %v427 = vsel %vm419, %v405, 0
    %v430 = vsel %vm419, %v406, 0
    %432 = vmatprep.subr.bf16.mxu0 %v396
    %433 = vmatpush1.bf16.msra.mxu0 %v395
    %434 = vmatprep.subr.bf16.mxu0 %v400
    %435 = vmatpush1.bf16.msra.mxu0 %v399
    %436 = vmatprep.subr.bf16.mxu0 %v424
    %437 = vmatpush1.bf16.msra.mxu0 %v421
    %438 = vmatprep.subr.bf16.mxu0 0
    %439 = vmatpush1.bf16.msra.mxu0 0
    %440 = vmatprep.subr.bf16.mxu0 0
    %441 = vmatpush1.bf16.msra.mxu0 0
    %442 = vmatprep.subr.bf16.mxu0 0
    %443 = vmatpush1.bf16.msra.mxu0 0
    %444 = vmatprep.subr.bf16.mxu0 0
    %445 = vmatpush1.bf16.msra.mxu0 0
    %446 = vmatprep.subr.bf16.mxu0 0
    %447 = vmatpush1.bf16.msra.mxu0 0
    %448 = vmatprep.subr.bf16.mxu0 0
    %449 = vmatpush1.bf16.msra.mxu0 0
    %450 = vmatprep.subr.bf16.mxu0 0
    %451 = vmatpush1.bf16.msra.mxu0 0
    %452 = vmatprep.subr.bf16.mxu0 0
    %453 = vmatpush1.bf16.msra.mxu0 0
    %454 = vmatprep.subr.bf16.mxu0 0
    %455 = vmatpush1.bf16.msra.mxu0 0
    %456 = vmatprep.subr.bf16.mxu0 0
    %457 = vmatpush1.bf16.msra.mxu0 0
    %458 = vmatprep.subr.bf16.mxu0 0
    %459 = vmatpush1.bf16.msra.mxu0 0
    %460 = vmatprep.subr.bf16.mxu0 0
    %461 = vmatpush1.bf16.msra.mxu0 0
    %462 = vmatprep.subr.bf16.mxu0 0
    %463 = vmatpush1.bf16.msra.mxu0 0
    %464 = vmatprep.mubr.bf16.mxu0 0
    %465 = vmatmul.mubr.bf16.gmra.mrb[0].mxu0 %v417
    %v466 = vpop.f32.mrb[0].mxu0
    %v467 = vadd.f32 %v312, %v466
    %v468 = vpop.f32.mrb[0].mxu0
    %v469 = vadd.f32 %v314, %v468
    %v470 = vpop.f32.mrb[0].mxu0
    %v471 = vpop.f32.mrb[0].mxu0
    %472 = vdwg.mxu0
    %473 = vmatprep.subr.bf16.mxu0 %v398
    %474 = vmatpush1.bf16.msra.mxu0 %v397
    %475 = vmatprep.subr.bf16.mxu0 %v402
    %476 = vmatpush1.bf16.msra.mxu0 %v401
    %477 = vmatprep.subr.bf16.mxu0 %v430
    %478 = vmatpush1.bf16.msra.mxu0 %v427
    %479 = vmatprep.subr.bf16.mxu0 0
    %480 = vmatpush1.bf16.msra.mxu0 0
    %481 = vmatprep.subr.bf16.mxu0 0
    %482 = vmatpush1.bf16.msra.mxu0 0
    %483 = vmatprep.subr.bf16.mxu0 0
    %484 = vmatpush1.bf16.msra.mxu0 0
    %485 = vmatprep.subr.bf16.mxu0 0
    %486 = vmatpush1.bf16.msra.mxu0 0
    %487 = vmatprep.subr.bf16.mxu0 0
    %488 = vmatpush1.bf16.msra.mxu0 0
    %489 = vmatprep.subr.bf16.mxu0 0
    %490 = vmatpush1.bf16.msra.mxu0 0
    %491 = vmatprep.subr.bf16.mxu0 0
    %492 = vmatpush1.bf16.msra.mxu0 0
    %493 = vmatprep.subr.bf16.mxu0 0
    %494 = vmatpush1.bf16.msra.mxu0 0
    %495 = vmatprep.subr.bf16.mxu0 0
    %496 = vmatpush1.bf16.msra.mxu0 0
    %497 = vmatprep.subr.bf16.mxu0 0
    %498 = vmatpush1.bf16.msra.mxu0 0
    %499 = vmatprep.subr.bf16.mxu0 0
    %500 = vmatpush1.bf16.msra.mxu0 0
    %501 = vmatprep.subr.bf16.mxu0 0
    %502 = vmatpush1.bf16.msra.mxu0 0
    %503 = vmatprep.subr.bf16.mxu0 0
    %504 = vmatpush1.bf16.msra.mxu0 0
    %505 = vmatprep.mubr.bf16.mxu0 0
    %506 = vmatmul.mubr.bf16.gmra.mrb[0].mxu0 %v417
    %v507 = vpop.f32.mrb[0].mxu0
    %v508 = vadd.f32 %v353, %v507
    %v509 = vpop.f32.mrb[0].mxu0
    %v510 = vadd.f32 %v355, %v509
    %v511 = vpop.f32.mrb[0].mxu0
    %v512 = vpop.f32.mrb[0].mxu0
    %513 = vdwg.mxu0
    %v514 = vld [vmem:[#allocation2 + $0x160] sm:$0xff]
    %v515 = vld [vmem:[#allocation2 + $0x168] sm:$0xff]
    %v518 = vunpack.c.l.b16 %v514
    %v519 = vunpack.c.h.b16 %v514
    %v520 = vunpack.c.l.b16 %v515
    %v521 = vunpack.c.h.b16 %v515
    %v522 = vpack.c.b16 %v518, %v518
    %v523 = vpack.c.b16 %v519, %v519
    %v524 = vpack.c.b16 %v520, %v520
    %v525 = vpack.c.b16 %v521, %v521
    %vm526 = vcmask 64512
    %v528 = vsel %vm526, %v72, 0
    %vm530 = vcmask 1043456
    %v532 = vsel %vm530, %v522, 0
    %v535 = vsel %vm530, %v523, 0
    %v538 = vsel %vm530, %v524, 0
    %v541 = vsel %vm530, %v525, 0
    %543 = vmatprep.subr.bf16.mxu0 %v535
    %544 = vmatpush1.bf16.msra.mxu0 %v532
    %545 = vmatprep.subr.bf16.mxu0 0
    %546 = vmatpush1.bf16.msra.mxu0 0
    %547 = vmatprep.subr.bf16.mxu0 0
    %548 = vmatpush1.bf16.msra.mxu0 0
    %549 = vmatprep.subr.bf16.mxu0 0
    %550 = vmatpush1.bf16.msra.mxu0 0
    %551 = vmatprep.subr.bf16.mxu0 0
    %552 = vmatpush1.bf16.msra.mxu0 0
    %553 = vmatprep.subr.bf16.mxu0 0
    %554 = vmatpush1.bf16.msra.mxu0 0
    %555 = vmatprep.subr.bf16.mxu0 0
    %556 = vmatpush1.bf16.msra.mxu0 0
    %557 = vmatprep.subr.bf16.mxu0 0
    %558 = vmatpush1.bf16.msra.mxu0 0
    %559 = vmatprep.subr.bf16.mxu0 0
    %560 = vmatpush1.bf16.msra.mxu0 0
    %561 = vmatprep.subr.bf16.mxu0 0
    %562 = vmatpush1.bf16.msra.mxu0 0
    %563 = vmatprep.subr.bf16.mxu0 0
    %564 = vmatpush1.bf16.msra.mxu0 0
    %565 = vmatprep.subr.bf16.mxu0 0
    %566 = vmatpush1.bf16.msra.mxu0 0
    %567 = vmatprep.subr.bf16.mxu0 0
    %568 = vmatpush1.bf16.msra.mxu0 0
    %569 = vmatprep.subr.bf16.mxu0 0
    %570 = vmatpush1.bf16.msra.mxu0 0
    %571 = vmatprep.subr.bf16.mxu0 0
    %572 = vmatpush1.bf16.msra.mxu0 0
    %573 = vmatprep.subr.bf16.mxu0 0
    %574 = vmatpush1.bf16.msra.mxu0 0
    %575 = vmatprep.mubr.bf16.mxu0 0
    %576 = vmatmul.mubr.bf16.gmra.mrb[0].mxu0 %v528
    %v577 = vpop.f32.mrb[0].mxu0
    %v578 = vadd.f32 0.0, %v577
    %v579 = vpop.f32.mrb[0].mxu0
    %v580 = vadd.f32 0.0, %v579
    %v581 = vpop.f32.mrb[0].mxu0
    %v582 = vpop.f32.mrb[0].mxu0
    %583 = vdwg.mxu0
    %584 = vmatprep.subr.bf16.mxu0 %v541
    %585 = vmatpush1.bf16.msra.mxu0 %v538
    %586 = vmatprep.subr.bf16.mxu0 0
    %587 = vmatpush1.bf16.msra.mxu0 0
    %588 = vmatprep.subr.bf16.mxu0 0
    %589 = vmatpush1.bf16.msra.mxu0 0
    %590 = vmatprep.subr.bf16.mxu0 0
    %591 = vmatpush1.bf16.msra.mxu0 0
    %592 = vmatprep.subr.bf16.mxu0 0
    %593 = vmatpush1.bf16.msra.mxu0 0
    %594 = vmatprep.subr.bf16.mxu0 0
    %595 = vmatpush1.bf16.msra.mxu0 0
    %596 = vmatprep.subr.bf16.mxu0 0
    %597 = vmatpush1.bf16.msra.mxu0 0
    %598 = vmatprep.subr.bf16.mxu0 0
    %599 = vmatpush1.bf16.msra.mxu0 0
    %600 = vmatprep.subr.bf16.mxu0 0
    %601 = vmatpush1.bf16.msra.mxu0 0
    %602 = vmatprep.subr.bf16.mxu0 0
    %603 = vmatpush1.bf16.msra.mxu0 0
    %604 = vmatprep.subr.bf16.mxu0 0
    %605 = vmatpush1.bf16.msra.mxu0 0
    %606 = vmatprep.subr.bf16.mxu0 0
    %607 = vmatpush1.bf16.msra.mxu0 0
    %608 = vmatprep.subr.bf16.mxu0 0
    %609 = vmatpush1.bf16.msra.mxu0 0
    %610 = vmatprep.subr.bf16.mxu0 0
    %611 = vmatpush1.bf16.msra.mxu0 0
    %612 = vmatprep.subr.bf16.mxu0 0
    %613 = vmatpush1.bf16.msra.mxu0 0
    %614 = vmatprep.subr.bf16.mxu0 0
    %615 = vmatpush1.bf16.msra.mxu0 0
    %616 = vmatprep.mubr.bf16.mxu0 0
    %617 = vmatmul.mubr.bf16.gmra.mrb[0].mxu0 %v528
    %v618 = vpop.f32.mrb[0].mxu0
    %v619 = vadd.f32 0.0, %v618
    %v620 = vpop.f32.mrb[0].mxu0
    %v621 = vadd.f32 0.0, %v620
    %v622 = vpop.f32.mrb[0].mxu0
    %v623 = vpop.f32.mrb[0].mxu0
    %624 = vdwg.mxu0
    %v625 = vadd.f32 %v467, %v578
    %v626 = vadd.f32 %v469, %v580
    %v627 = vadd.f32 %v508, %v619
    %v628 = vadd.f32 %v510, %v621
    %v629 = vld [vmem:[#allocation7] sm:$0xf]
    %v631 = vlaneseq
    %v632 = vshrl.u32 %v631, 7
    %v633 = vsub.s32 0, %v632
    %v634 = vrot.slane %v629, %v633
    %v635 = vlaneseq
    %v636 = vshrl.u32 %v635, 7
    %v637 = vsub.s32 1, %v636
    %v638 = vrot.slane %v629, %v637
    %v639 = vlaneseq
    %v640 = vshrl.u32 %v639, 7
    %v641 = vsub.s32 2, %v640
    %v642 = vrot.slane %v629, %v641
    %v643 = vlaneseq
    %v644 = vshrl.u32 %v643, 7
    %v645 = vsub.s32 3, %v644
    %v646 = vrot.slane %v629, %v645
    %v651 = vadd.f32 %v625, %v634
    %v652 = vadd.f32 %v626, %v638
    %v653 = vadd.f32 %v627, %v642
    %v654 = vadd.f32 %v628, %v646
    %v655 = vmax.f32 %v651, 0.0
    %v656 = vmax.f32 %v652, 0.0
    %v657 = vmax.f32 %v653, 0.0
    %v658 = vmax.f32 %v654, 0.0
    %v659 = vpack.c.bf16 %v655, %v655
    %v660 = vpack.c.bf16 %v656, %v656
    %v661 = vpack.c.bf16 %v657, %v657
    %v662 = vpack.c.bf16 %v658, %v658
    %v663 = vld [vmem:[#allocation5] sm:$0xf]
    %v664 = vld [vmem:[#allocation5 + $0x4] sm:$0xf]
    %v665 = vld [vmem:[#allocation5 + $0x8] sm:$0xf]
    %v666 = vld [vmem:[#allocation5 + $0xc] sm:$0xf]
    %v667 = vld [vmem:[#allocation5 + $0x10] sm:$0xf]
    %v668 = vld [vmem:[#allocation5 + $0x14] sm:$0xf]
    %v669 = vld [vmem:[#allocation5 + $0x18] sm:$0xf]
    %v670 = vld [vmem:[#allocation5 + $0x1c] sm:$0xf]
    %v671 = vld [vmem:[#allocation5 + $0x20] sm:$0xf]
    %v672 = vld [vmem:[#allocation5 + $0x24] sm:$0xf]
    %v673 = vld [vmem:[#allocation5 + $0x28] sm:$0xf]
    %v674 = vld [vmem:[#allocation5 + $0x2c] sm:$0xf]
    %v675 = vld [vmem:[#allocation5 + $0x30] sm:$0xf]
    %v676 = vld [vmem:[#allocation5 + $0x34] sm:$0xf]
    %v677 = vld [vmem:[#allocation5 + $0x38] sm:$0xf]
    %v678 = vld [vmem:[#allocation5 + $0x3c] sm:$0xf]
    %v679 = vld [vmem:[#allocation5 + $0x40] sm:$0xf]
    %v680 = vld [vmem:[#allocation5 + $0x44] sm:$0xf]
    %v681 = vld [vmem:[#allocation5 + $0x48] sm:$0xf]
    %v682 = vld [vmem:[#allocation5 + $0x4c] sm:$0xf]
    %v683 = vld [vmem:[#allocation5 + $0x50] sm:$0xf]
    %v684 = vld [vmem:[#allocation5 + $0x54] sm:$0xf]
    %v685 = vld [vmem:[#allocation5 + $0x58] sm:$0xf]
    %v686 = vld [vmem:[#allocation5 + $0x5c] sm:$0xf]
    %v687 = vld [vmem:[#allocation5 + $0x60] sm:$0xf]
    %v688 = vld [vmem:[#allocation5 + $0x64] sm:$0xf]
    %v689 = vld [vmem:[#allocation5 + $0x68] sm:$0xf]
    %v690 = vld [vmem:[#allocation5 + $0x6c] sm:$0xf]
    %v691 = vld [vmem:[#allocation5 + $0x70] sm:$0xf]
    %v692 = vld [vmem:[#allocation5 + $0x74] sm:$0xf]
    %v693 = vld [vmem:[#allocation5 + $0x78] sm:$0xf]
    %v694 = vld [vmem:[#allocation5 + $0x7c] sm:$0xf]
    %v695 = vld [vmem:[#allocation5 + $0x80] sm:$0xf]
    %v696 = vld [vmem:[#allocation5 + $0x84] sm:$0xf]
    %v697 = vld [vmem:[#allocation5 + $0x88] sm:$0xf]
    %v698 = vld [vmem:[#allocation5 + $0x8c] sm:$0xf]
    %v699 = vld [vmem:[#allocation5 + $0x90] sm:$0xf]
    %v700 = vld [vmem:[#allocation5 + $0x94] sm:$0xf]
    %v701 = vld [vmem:[#allocation5 + $0x98] sm:$0xf]
    %v702 = vld [vmem:[#allocation5 + $0x9c] sm:$0xf]
    %v703 = vld [vmem:[#allocation5 + $0xa0] sm:$0xf]
    %v704 = vld [vmem:[#allocation5 + $0xa4] sm:$0xf]
    %v705 = vld [vmem:[#allocation5 + $0xa8] sm:$0xf]
    %v706 = vld [vmem:[#allocation5 + $0xac] sm:$0xf]
    %v707 = vld [vmem:[#allocation5 + $0xb0] sm:$0xf]
    %v708 = vld [vmem:[#allocation5 + $0xb4] sm:$0xf]
    %v709 = vld [vmem:[#allocation5 + $0xb8] sm:$0xf]
    %v710 = vld [vmem:[#allocation5 + $0xbc] sm:$0xf]
    %v711 = vld [vmem:[#allocation5 + $0xc0] sm:$0xf]
    %v712 = vld [vmem:[#allocation5 + $0xc4] sm:$0xf]
    %v713 = vld [vmem:[#allocation5 + $0xc8] sm:$0xf]
    %v714 = vld [vmem:[#allocation5 + $0xcc] sm:$0xf]
    %v715 = vld [vmem:[#allocation5 + $0xd0] sm:$0xf]
    %v716 = vld [vmem:[#allocation5 + $0xd4] sm:$0xf]
    %v717 = vld [vmem:[#allocation5 + $0xd8] sm:$0xf]
    %v718 = vld [vmem:[#allocation5 + $0xdc] sm:$0xf]
    %v719 = vld [vmem:[#allocation5 + $0xe0] sm:$0xf]
    %v720 = vld [vmem:[#allocation5 + $0xe4] sm:$0xf]
    %v721 = vld [vmem:[#allocation5 + $0xe8] sm:$0xf]
    %v722 = vld [vmem:[#allocation5 + $0xec] sm:$0xf]
    %v723 = vld [vmem:[#allocation5 + $0xf0] sm:$0xf]
    %v724 = vld [vmem:[#allocation5 + $0xf4] sm:$0xf]
    %v725 = vld [vmem:[#allocation5 + $0xf8] sm:$0xf]
    %v726 = vld [vmem:[#allocation5 + $0xfc] sm:$0xf]
    %v727 = vld [vmem:[#allocation7 + $0x4] sm:$0x1]
    %v729 = vlaneseq
    %v730 = vshrl.u32 %v729, 7
    %v731 = vsub.s32 0, %v730
    %v732 = vrot.slane %v727, %v731
    %v798 = vunpack.c.l.b16 %v663
    %v799 = vunpack.c.l.b16 %v664
    %v800 = vunpack.c.l.b16 %v665
    %v801 = vunpack.c.l.b16 %v666
    %v802 = vunpack.c.l.b16 %v667
    %v803 = vunpack.c.l.b16 %v668
    %v804 = vunpack.c.l.b16 %v669
    %v805 = vunpack.c.l.b16 %v670
    %v806 = vunpack.c.l.b16 %v671
    %v807 = vunpack.c.l.b16 %v672
    %v808 = vunpack.c.l.b16 %v673
    %v809 = vunpack.c.l.b16 %v674
    %v810 = vunpack.c.l.b16 %v675
    %v811 = vunpack.c.l.b16 %v676
    %v812 = vunpack.c.l.b16 %v677
    %v813 = vunpack.c.l.b16 %v678
    %v814 = vunpack.c.l.b16 %v679
    %v815 = vunpack.c.l.b16 %v680
    %v816 = vunpack.c.l.b16 %v681
    %v817 = vunpack.c.l.b16 %v682
    %v818 = vunpack.c.l.b16 %v683
    %v819 = vunpack.c.l.b16 %v684
    %v820 = vunpack.c.l.b16 %v685
    %v821 = vunpack.c.l.b16 %v686
    %v822 = vunpack.c.l.b16 %v687
    %v823 = vunpack.c.l.b16 %v688
    %v824 = vunpack.c.l.b16 %v689
    %v825 = vunpack.c.l.b16 %v690
    %v826 = vunpack.c.l.b16 %v691
    %v827 = vunpack.c.l.b16 %v692
    %v828 = vunpack.c.l.b16 %v693
    %v829 = vunpack.c.l.b16 %v694
    %v830 = vunpack.c.l.b16 %v695
    %v831 = vunpack.c.l.b16 %v696
    %v832 = vunpack.c.l.b16 %v697
    %v833 = vunpack.c.l.b16 %v698
    %v834 = vunpack.c.l.b16 %v699
    %v835 = vunpack.c.l.b16 %v700
    %v836 = vunpack.c.l.b16 %v701
    %v837 = vunpack.c.l.b16 %v702
    %v838 = vunpack.c.l.b16 %v703
    %v839 = vunpack.c.l.b16 %v704
    %v840 = vunpack.c.l.b16 %v705
    %v841 = vunpack.c.l.b16 %v706
    %v842 = vunpack.c.l.b16 %v707
    %v843 = vunpack.c.l.b16 %v708
    %v844 = vunpack.c.l.b16 %v709
    %v845 = vunpack.c.l.b16 %v710
    %v846 = vunpack.c.l.b16 %v711
    %v847 = vunpack.c.l.b16 %v712
    %v848 = vunpack.c.l.b16 %v713
    %v849 = vunpack.c.l.b16 %v714
    %v850 = vunpack.c.l.b16 %v715
    %v851 = vunpack.c.l.b16 %v716
    %v852 = vunpack.c.l.b16 %v717
    %v853 = vunpack.c.l.b16 %v718
    %v854 = vunpack.c.l.b16 %v719
    %v855 = vunpack.c.l.b16 %v720
    %v856 = vunpack.c.l.b16 %v721
    %v857 = vunpack.c.l.b16 %v722
    %v858 = vunpack.c.l.b16 %v723
    %v859 = vunpack.c.l.b16 %v724
    %v860 = vunpack.c.l.b16 %v725
    %v861 = vunpack.c.l.b16 %v726
    %v862 = vpack.c.b16 %v799, %v798
    %v863 = vpack.c.b16 %v801, %v800
    %v864 = vpack.c.b16 %v803, %v802
    %v865 = vpack.c.b16 %v805, %v804
    %v866 = vpack.c.b16 %v807, %v806
    %v867 = vpack.c.b16 %v809, %v808
    %v868 = vpack.c.b16 %v811, %v810
    %v869 = vpack.c.b16 %v813, %v812
    %v870 = vpack.c.b16 %v815, %v814
    %v871 = vpack.c.b16 %v817, %v816
    %v872 = vpack.c.b16 %v819, %v818
    %v873 = vpack.c.b16 %v821, %v820
    %v874 = vpack.c.b16 %v823, %v822
    %v875 = vpack.c.b16 %v825, %v824
    %v876 = vpack.c.b16 %v827, %v826
    %v877 = vpack.c.b16 %v829, %v828
    %v878 = vpack.c.b16 %v831, %v830
    %v879 = vpack.c.b16 %v833, %v832
    %v880 = vpack.c.b16 %v835, %v834
    %v881 = vpack.c.b16 %v837, %v836
    %v882 = vpack.c.b16 %v839, %v838
    %v883 = vpack.c.b16 %v841, %v840
    %v884 = vpack.c.b16 %v843, %v842
    %v885 = vpack.c.b16 %v845, %v844
    %v886 = vpack.c.b16 %v847, %v846
    %v887 = vpack.c.b16 %v849, %v848
    %v888 = vpack.c.b16 %v851, %v850
    %v889 = vpack.c.b16 %v853, %v852
    %v890 = vpack.c.b16 %v855, %v854
    %v891 = vpack.c.b16 %v857, %v856
    %v892 = vpack.c.b16 %v859, %v858
    %v893 = vpack.c.b16 %v861, %v860
    %926 = vmatprep.subr.bf16.mxu0 0
    %927 = vmatpush1.bf16.msra.mxu0 %v862
    %928 = vmatprep.subr.bf16.mxu0 0
    %929 = vmatpush1.bf16.msra.mxu0 %v863
    %930 = vmatprep.subr.bf16.mxu0 0
    %931 = vmatpush1.bf16.msra.mxu0 %v864
    %932 = vmatprep.subr.bf16.mxu0 0
    %933 = vmatpush1.bf16.msra.mxu0 %v865
    %934 = vmatprep.subr.bf16.mxu0 0
    %935 = vmatpush1.bf16.msra.mxu0 %v866
    %936 = vmatprep.subr.bf16.mxu0 0
    %937 = vmatpush1.bf16.msra.mxu0 %v867
    %938 = vmatprep.subr.bf16.mxu0 0
    %939 = vmatpush1.bf16.msra.mxu0 %v868
    %940 = vmatprep.subr.bf16.mxu0 0
    %941 = vmatpush1.bf16.msra.mxu0 %v869
    %942 = vmatprep.subr.bf16.mxu0 0
    %943 = vmatpush1.bf16.msra.mxu0 %v870
    %944 = vmatprep.subr.bf16.mxu0 0
    %945 = vmatpush1.bf16.msra.mxu0 %v871
    %946 = vmatprep.subr.bf16.mxu0 0
    %947 = vmatpush1.bf16.msra.mxu0 %v872
    %948 = vmatprep.subr.bf16.mxu0 0
    %949 = vmatpush1.bf16.msra.mxu0 %v873
    %950 = vmatprep.subr.bf16.mxu0 0
    %951 = vmatpush1.bf16.msra.mxu0 %v874
    %952 = vmatprep.subr.bf16.mxu0 0
    %953 = vmatpush1.bf16.msra.mxu0 %v875
    %954 = vmatprep.subr.bf16.mxu0 0
    %955 = vmatpush1.bf16.msra.mxu0 %v876
    %956 = vmatprep.subr.bf16.mxu0 0
    %957 = vmatpush1.bf16.msra.mxu0 %v877
    %958 = vmatprep.mubr.bf16.mxu0 %v660
    %959 = vmatmul.mubr.bf16.gmra.mrb[0].mxu0 %v659
    %v960 = vpop.f32.mrb[0].mxu0
    %v961 = vadd.f32 %v732, %v960
    %v962 = vpop.f32.mrb[0].mxu0
    %v963 = vpop.f32.mrb[0].mxu0
    %v964 = vpop.f32.mrb[0].mxu0
    %965 = vdwg.mxu0
    %966 = vmatprep.subr.bf16.mxu0 0
    %967 = vmatpush1.bf16.msra.mxu0 %v878
    %968 = vmatprep.subr.bf16.mxu0 0
    %969 = vmatpush1.bf16.msra.mxu0 %v879
    %970 = vmatprep.subr.bf16.mxu0 0
    %971 = vmatpush1.bf16.msra.mxu0 %v880
    %972 = vmatprep.subr.bf16.mxu0 0
    %973 = vmatpush1.bf16.msra.mxu0 %v881
    %974 = vmatprep.subr.bf16.mxu0 0
    %975 = vmatpush1.bf16.msra.mxu0 %v882
    %976 = vmatprep.subr.bf16.mxu0 0
    %977 = vmatpush1.bf16.msra.mxu0 %v883
    %978 = vmatprep.subr.bf16.mxu0 0
    %979 = vmatpush1.bf16.msra.mxu0 %v884
    %980 = vmatprep.subr.bf16.mxu0 0
    %981 = vmatpush1.bf16.msra.mxu0 %v885
    %982 = vmatprep.subr.bf16.mxu0 0
    %983 = vmatpush1.bf16.msra.mxu0 %v886
    %984 = vmatprep.subr.bf16.mxu0 0
    %985 = vmatpush1.bf16.msra.mxu0 %v887
    %986 = vmatprep.subr.bf16.mxu0 0
    %987 = vmatpush1.bf16.msra.mxu0 %v888
    %988 = vmatprep.subr.bf16.mxu0 0
    %989 = vmatpush1.bf16.msra.mxu0 %v889
    %990 = vmatprep.subr.bf16.mxu0 0
    %991 = vmatpush1.bf16.msra.mxu0 %v890
    %992 = vmatprep.subr.bf16.mxu0 0
    %993 = vmatpush1.bf16.msra.mxu0 %v891
    %994 = vmatprep.subr.bf16.mxu0 0
    %995 = vmatpush1.bf16.msra.mxu0 %v892
    %996 = vmatprep.subr.bf16.mxu0 0
    %997 = vmatpush1.bf16.msra.mxu0 %v893
    %998 = vmatprep.mubr.bf16.mxu0 %v662
    %999 = vmatmul.mubr.bf16.gmra.mrb[0].mxu0 %v661
    %v1000 = vpop.f32.mrb[0].mxu0
    %v1001 = vadd.f32 %v961, %v1000
    %v1002 = vpop.f32.mrb[0].mxu0
    %v1003 = vpop.f32.mrb[0].mxu0
    %v1004 = vpop.f32.mrb[0].mxu0
    %1005 = vdwg.mxu0
    %v1006 = vmax.f32 %v1001, 0.0
    %v1007 = vpack.c.bf16 %v1006, %v1006
    %v1008 = vld [vmem:[#allocation5 + $0x100] sm:$0xf]
    %v1009 = vld [vmem:[#allocation5 + $0x104] sm:$0xf]
    %v1010 = vld [vmem:[#allocation5 + $0x108] sm:$0xf]
    %v1011 = vld [vmem:[#allocation5 + $0x10c] sm:$0xf]
    %v1012 = vld [vmem:[#allocation5 + $0x110] sm:$0xf]
    %v1013 = vld [vmem:[#allocation5 + $0x114] sm:$0xf]
    %v1014 = vld [vmem:[#allocation5 + $0x118] sm:$0xf]
    %v1015 = vld [vmem:[#allocation5 + $0x11c] sm:$0xf]
    %v1016 = vld [vmem:[#allocation5 + $0x120] sm:$0xf]
    %v1017 = vld [vmem:[#allocation5 + $0x124] sm:$0xf]
    %v1018 = vld [vmem:[#allocation5 + $0x128] sm:$0xf]
    %v1019 = vld [vmem:[#allocation5 + $0x12c] sm:$0xf]
    %v1020 = vld [vmem:[#allocation5 + $0x130] sm:$0xf]
    %v1021 = vld [vmem:[#allocation5 + $0x134] sm:$0xf]
    %v1022 = vld [vmem:[#allocation5 + $0x138] sm:$0xf]
    %v1023 = vld [vmem:[#allocation5 + $0x13c] sm:$0xf]
    %v1024 = vld [vmem:[#allocation7 + $0x5] sm:$0x1]
    %v1026 = vlaneseq
    %v1027 = vshrl.u32 %v1026, 7
    %v1028 = vsub.s32 0, %v1027
    %v1029 = vrot.slane %v1024, %v1028
    %v1047 = vunpack.c.l.b16 %v1008
    %v1048 = vunpack.c.l.b16 %v1009
    %v1049 = vunpack.c.l.b16 %v1010
    %v1050 = vunpack.c.l.b16 %v1011
    %v1051 = vunpack.c.l.b16 %v1012
    %v1052 = vunpack.c.l.b16 %v1013
    %v1053 = vunpack.c.l.b16 %v1014
    %v1054 = vunpack.c.l.b16 %v1015
    %v1055 = vunpack.c.l.b16 %v1016
    %v1056 = vunpack.c.l.b16 %v1017
    %v1057 = vunpack.c.l.b16 %v1018
    %v1058 = vunpack.c.l.b16 %v1019
    %v1059 = vunpack.c.l.b16 %v1020
    %v1060 = vunpack.c.l.b16 %v1021
    %v1061 = vunpack.c.l.b16 %v1022
    %v1062 = vunpack.c.l.b16 %v1023
    %v1063 = vpack.c.b16 %v1048, %v1047
    %v1064 = vpack.c.b16 %v1050, %v1049
    %v1065 = vpack.c.b16 %v1052, %v1051
    %v1066 = vpack.c.b16 %v1054, %v1053
    %v1067 = vpack.c.b16 %v1056, %v1055
    %v1068 = vpack.c.b16 %v1058, %v1057
    %v1069 = vpack.c.b16 %v1060, %v1059
    %v1070 = vpack.c.b16 %v1062, %v1061
    %1079 = vmatprep.subr.bf16.mxu0 0
    %1080 = vmatpush1.bf16.msra.mxu0 %v1063
    %1081 = vmatprep.subr.bf16.mxu0 0
    %1082 = vmatpush1.bf16.msra.mxu0 %v1064
    %1083 = vmatprep.subr.bf16.mxu0 0
    %1084 = vmatpush1.bf16.msra.mxu0 %v1065
    %1085 = vmatprep.subr.bf16.mxu0 0
    %1086 = vmatpush1.bf16.msra.mxu0 %v1066
    %1087 = vmatprep.subr.bf16.mxu0 0
    %1088 = vmatpush1.bf16.msra.mxu0 %v1067
    %1089 = vmatprep.subr.bf16.mxu0 0
    %1090 = vmatpush1.bf16.msra.mxu0 %v1068
    %1091 = vmatprep.subr.bf16.mxu0 0
    %1092 = vmatpush1.bf16.msra.mxu0 %v1069
    %1093 = vmatprep.subr.bf16.mxu0 0
    %1094 = vmatpush1.bf16.msra.mxu0 %v1070
    %1095 = vmatprep.subr.bf16.mxu0 0
    %1096 = vmatpush1.bf16.msra.mxu0 0
    %1097 = vmatprep.subr.bf16.mxu0 0
    %1098 = vmatpush1.bf16.msra.mxu0 0
    %1099 = vmatprep.subr.bf16.mxu0 0
    %1100 = vmatpush1.bf16.msra.mxu0 0
    %1101 = vmatprep.subr.bf16.mxu0 0
    %1102 = vmatpush1.bf16.msra.mxu0 0
    %1103 = vmatprep.subr.bf16.mxu0 0
    %1104 = vmatpush1.bf16.msra.mxu0 0
    %1105 = vmatprep.subr.bf16.mxu0 0
    %1106 = vmatpush1.bf16.msra.mxu0 0
    %1107 = vmatprep.subr.bf16.mxu0 0
    %1108 = vmatpush1.bf16.msra.mxu0 0
    %1109 = vmatprep.subr.bf16.mxu0 0
    %1110 = vmatpush1.bf16.msra.mxu0 0
    %1111 = vmatprep.mubr.bf16.mxu0 0
    %1112 = vmatmul.mubr.bf16.gmra.mrb[0].mxu0 %v1007
    %v1113 = vpop.f32.mrb[0].mxu0
    %v1114 = vadd.f32 %v1029, %v1113
    %v1115 = vpop.f32.mrb[0].mxu0
    %v1116 = vpop.f32.mrb[0].mxu0
    %v1117 = vpop.f32.mrb[0].mxu0
    %1118 = vdwg.mxu0
    %v1119 = vld [vmem:[#allocation5 + $0x140] sm:$0xf]
    %v1120 = vld [vmem:[#allocation5 + $0x144] sm:$0xf]
    %v1121 = vld [vmem:[#allocation5 + $0x148] sm:$0xf]
    %v1122 = vld [vmem:[#allocation5 + $0x14c] sm:$0xf]
    %v1123 = vld [vmem:[#allocation5 + $0x150] sm:$0xf]
    %v1124 = vld [vmem:[#allocation5 + $0x154] sm:$0xf]
    %v1125 = vld [vmem:[#allocation5 + $0x158] sm:$0xf]
    %v1126 = vld [vmem:[#allocation5 + $0x15c] sm:$0xf]
    %v1127 = vld [vmem:[#allocation5 + $0x160] sm:$0xf]
    %v1128 = vld [vmem:[#allocation5 + $0x164] sm:$0xf]
    %v1129 = vld [vmem:[#allocation5 + $0x168] sm:$0xf]
    %v1130 = vld [vmem:[#allocation5 + $0x16c] sm:$0xf]
    %v1131 = vld [vmem:[#allocation5 + $0x170] sm:$0xf]
    %v1132 = vld [vmem:[#allocation5 + $0x174] sm:$0xf]
    %v1133 = vld [vmem:[#allocation5 + $0x178] sm:$0xf]
    %v1134 = vld [vmem:[#allocation5 + $0x17c] sm:$0xf]
    %v1135 = vld [vmem:[#allocation7 + $0x6] sm:$0x1]
    %v1137 = vlaneseq
    %v1138 = vshrl.u32 %v1137, 7
    %v1139 = vsub.s32 0, %v1138
    %v1140 = vrot.slane %v1135, %v1139
    %v1158 = vunpack.c.l.b16 %v1119
    %v1159 = vunpack.c.l.b16 %v1120
    %v1160 = vunpack.c.l.b16 %v1121
    %v1161 = vunpack.c.l.b16 %v1122
    %v1162 = vunpack.c.l.b16 %v1123
    %v1163 = vunpack.c.l.b16 %v1124
    %v1164 = vunpack.c.l.b16 %v1125
    %v1165 = vunpack.c.l.b16 %v1126
    %v1166 = vunpack.c.l.b16 %v1127
    %v1167 = vunpack.c.l.b16 %v1128
    %v1168 = vunpack.c.l.b16 %v1129
    %v1169 = vunpack.c.l.b16 %v1130
    %v1170 = vunpack.c.l.b16 %v1131
    %v1171 = vunpack.c.l.b16 %v1132
    %v1172 = vunpack.c.l.b16 %v1133
    %v1173 = vunpack.c.l.b16 %v1134
    %v1174 = vpack.c.b16 %v1159, %v1158
    %v1175 = vpack.c.b16 %v1161, %v1160
    %v1176 = vpack.c.b16 %v1163, %v1162
    %v1177 = vpack.c.b16 %v1165, %v1164
    %v1178 = vpack.c.b16 %v1167, %v1166
    %v1179 = vpack.c.b16 %v1169, %v1168
    %v1180 = vpack.c.b16 %v1171, %v1170
    %v1181 = vpack.c.b16 %v1173, %v1172
    %1190 = vmatprep.subr.bf16.mxu0 0
    %1191 = vmatpush1.bf16.msra.mxu0 %v1174
    %1192 = vmatprep.subr.bf16.mxu0 0
    %1193 = vmatpush1.bf16.msra.mxu0 %v1175
    %1194 = vmatprep.subr.bf16.mxu0 0
    %1195 = vmatpush1.bf16.msra.mxu0 %v1176
    %1196 = vmatprep.subr.bf16.mxu0 0
    %1197 = vmatpush1.bf16.msra.mxu0 %v1177
    %1198 = vmatprep.subr.bf16.mxu0 0
    %1199 = vmatpush1.bf16.msra.mxu0 %v1178
    %1200 = vmatprep.subr.bf16.mxu0 0
    %1201 = vmatpush1.bf16.msra.mxu0 %v1179
    %1202 = vmatprep.subr.bf16.mxu0 0
    %1203 = vmatpush1.bf16.msra.mxu0 %v1180
    %1204 = vmatprep.subr.bf16.mxu0 0
    %1205 = vmatpush1.bf16.msra.mxu0 %v1181
    %1206 = vmatprep.subr.bf16.mxu0 0
    %1207 = vmatpush1.bf16.msra.mxu0 0
    %1208 = vmatprep.subr.bf16.mxu0 0
    %1209 = vmatpush1.bf16.msra.mxu0 0
    %1210 = vmatprep.subr.bf16.mxu0 0
    %1211 = vmatpush1.bf16.msra.mxu0 0
    %1212 = vmatprep.subr.bf16.mxu0 0
    %1213 = vmatpush1.bf16.msra.mxu0 0
    %1214 = vmatprep.subr.bf16.mxu0 0
    %1215 = vmatpush1.bf16.msra.mxu0 0
    %1216 = vmatprep.subr.bf16.mxu0 0
    %1217 = vmatpush1.bf16.msra.mxu0 0
    %1218 = vmatprep.subr.bf16.mxu0 0
    %1219 = vmatpush1.bf16.msra.mxu0 0
    %1220 = vmatprep.subr.bf16.mxu0 0
    %1221 = vmatpush1.bf16.msra.mxu0 0
    %1222 = vmatprep.mubr.bf16.mxu0 0
    %1223 = vmatmul.mubr.bf16.gmra.mrb[0].mxu0 %v1007
    %v1224 = vpop.f32.mrb[0].mxu0
    %v1225 = vadd.f32 %v1140, %v1224
    %v1226 = vpop.f32.mrb[0].mxu0
    %v1227 = vpop.f32.mrb[0].mxu0
    %v1228 = vpop.f32.mrb[0].mxu0
    %1229 = vdwg.mxu0
    %vm1230 = vcmask 353280
    %1231 = vst.msk [vmem:[#allocation8] sm:$0x3] %vm1230, %v1114
    %1232 = vst.msk [vmem:[#allocation9] sm:$0x3] %vm1230, %v1225
    // Predicated region
    $region38: #{cnn_encoder_forward.1} parent=1 // pred_check
      _
    $region39: #{cnn_encoder_forward.1} parent=1 // pred_check_branch
      %1234 = sbr.rel (0) target = $region41
    $region40: #{cnn_encoder_forward.1} parent=1 // pred_region
      %s1236 = ssub.s32 32, 32
      %1237 = vsyncadd [#allocation4], %s1236
      %s1239 = sshll.u32 [#allocation8], 4
      %s1240 = int_to_ptr.vmem [resolvable:$true] %s1239
      %1242 = dma.vmem_to_hbm [thread:$0]  %s1240, 32, %s6, [#allocation4]
    $region41: #{cnn_encoder_forward.1} parent=1 // pred_fallthru
      _
    // Predicated region
    $region42: #{cnn_encoder_forward.1} parent=1 // pred_check
      _
    $region43: #{cnn_encoder_forward.1} parent=1 // pred_check_branch
      %1244 = sbr.rel (0) target = $region45
    $region44: #{cnn_encoder_forward.1} parent=1 // pred_region
      %s1246 = ssub.s32 32, 32
      %1247 = vsyncadd [#allocation10], %s1246
      %s1249 = sshll.u32 [#allocation9], 4
      %s1250 = int_to_ptr.vmem [resolvable:$true] %s1249
      %1252 = dma.vmem_to_hbm [thread:$0]  %s1250, 32, %s7, [#allocation10]
    $region45: #{cnn_encoder_forward.1} parent=1 // pred_fallthru
      _
    // Predicated region
    $region46: #{cnn_encoder_forward.1} parent=1 // pred_check
      _
    $region47: #{cnn_encoder_forward.1} parent=1 // pred_check_branch
      %1254 = sbr.rel (0) target = $region49
    $region48: #{cnn_encoder_forward.1} parent=1 // pred_region
      %1255 = dma.done [#allocation4], 32
    $region49: #{cnn_encoder_forward.1} parent=1 // pred_fallthru
      _
    // Predicated region
    $region50: #{cnn_encoder_forward.1} parent=1 // pred_check
      _
    $region51: #{cnn_encoder_forward.1} parent=1 // pred_check_branch
      %1257 = sbr.rel (0) target = $region53
    $region52: #{cnn_encoder_forward.1} parent=1 // pred_region
      %1258 = dma.done [#allocation10], 32
    $region53: #{cnn_encoder_forward.1} parent=1 // pred_fallthru
      _
    %1259 = vsyncpa [#allocation3], 1
    %1260 = vsyncpa [#allocation6], 1
    %1261 = vsyncpa [#allocation4], 1
    %1262 = vsyncpa [#allocation10], 1

</llo_original>
